<compile_context>
chip_gen: v7x
topology: tpu7x:2x2x1
jax: 0.10.0
libtpu: 0.0.40
codegen_flags: <defaults>
</compile_context>

<pallas_src>
import jax
import jax.numpy as jnp
from jax.experimental import pallas as pl
from jax.experimental.pallas import tpu as pltpu

_PACK = 8            # batch rows packed per vreg row (lane-packing factor)
_MAX_TMP = 1024      # packed rows per grid step  (=> up to 8192 batch rows/step)
_PALLAS_MIN_BATCH = 1024   # below this, plain jnp is faster than a kernel launch


def _behavior_kernel(xs_ref, cmd_ref, w1_ref, b1_ref, w2_ref, b2_ref,
                     w3_ref, b3_ref, out_ref):
    # fc1 / fc2 on the MXU with 8-way block-diagonal weights (f32 accumulate).
    h1 = jnp.dot(xs_ref[...], w1_ref[...], preferred_element_type=jnp.float32)
    h2 = jnp.dot(cmd_ref[...], w2_ref[...], preferred_element_type=jnp.float32)

    # sigmoid(h) == 0.5 * tanh(0.5 * h) + 0.5  -> a single EUP op per element.
    x = 0.5 * jnp.tanh(0.5 * (h1 + b1_ref[...])) + 0.5
    y = 0.5 * jnp.tanh(0.5 * (h2 + b2_ref[...])) + 0.5

    # Gate, then fc3 on the MXU.
    z = x * y
    out = jnp.dot(z, w3_ref[...], preferred_element_type=jnp.float32)
    out_ref[...] = (out + b3_ref[...]).astype(out_ref.dtype)


def _behavior_ref(state, desired_return, desired_horizon, params, command_scale):
    """Plain-jnp reference (also the small-batch fallback path)."""
    w1, b1, w2, b2, w3, b3 = params
    x = jax.nn.sigmoid(state @ w1 + b1)
    cmd = jnp.concatenate([desired_return, desired_horizon], axis=1) * command_scale
    y = jax.nn.sigmoid(cmd @ w2 + b2)
    return (x * y) @ w3 + b3


def behavior_func_forward(state, desired_return, desired_horizon, params,
                          command_scale, *, use_pallas=None):
    """state: [B, S]; desired_return/desired_horizon: [B, 1]; returns [B, A] f32.

    params = (w1, b1, w2, b2, w3, b3) with weights stored transposed,
    i.e. w*: [in_features, out_features], b*: [out_features].
    command_scale: scalar or per-command array of shape (2,).
    """
    w1, b1, w2, b2, w3, b3 = params
    B, S = state.shape
    H = w1.shape[1]
    A = w3.shape[1]

    if use_pallas is None:
        use_pallas = B >= _PALLAS_MIN_BATCH
    if not use_pallas:
        return _behavior_ref(state, desired_return, desired_horizon, params,
                             command_scale)

    P = _PACK
    f32 = jnp.float32

    state = jnp.asarray(state, f32)
    ret = jnp.asarray(desired_return, f32)
    hor = jnp.asarray(desired_horizon, f32)

    # Fold command_scale into the fc2 weight rows (scalar or per-command [2]).
    scale = jnp.asarray(command_scale, f32).reshape(-1)
    if scale.shape[0] == 1:
        scale = jnp.broadcast_to(scale, (2,))
    w2s = jnp.asarray(w2, f32) * scale[:, None]              # [2, H]

    # 8-way lane packing: block-diagonal weights / tiled biases (tiny, resident).
    eye = jnp.eye(P, dtype=f32)
    w1bd = jnp.kron(eye, jnp.asarray(w1, f32))               # [P*S, P*H]
    w2bd = jnp.kron(eye, w2s)                                 # [P*2, P*H]
    w3bd = jnp.kron(eye, jnp.asarray(w3, f32))               # [P*H, P*A]
    b1t = jnp.tile(jnp.asarray(b1, f32), P).reshape(1, P * H)
    b2t = jnp.tile(jnp.asarray(b2, f32), P).reshape(1, P * H)
    b3t = jnp.tile(jnp.asarray(b3, f32), P).reshape(1, P * A)

    # Pad batch to a multiple of the packing factor (static no-op when aligned).
    Bp = ((B + P - 1) // P) * P
    if Bp != B:
        pad = ((0, Bp - B), (0, 0))
        state = jnp.pad(state, pad)
        ret = jnp.pad(ret, pad)
        hor = jnp.pad(hor, pad)

    cmd = jnp.concatenate([ret, hor], axis=1)                 # [Bp, 2] (tiny)

    n_packed = Bp // P
    xs_p = state.reshape(n_packed, P * S)                     # free row-major reshape
    cmd_p = cmd.reshape(n_packed, P * 2)

    # Batch tile in packed rows.  Large tile amortizes grid-step overhead;
    # rows are independent, so the ragged last block (masked stores) is safe.
    if n_packed <= _MAX_TMP:
        tmp = n_packed                 # single block, equal to the full dim
    else:
        tmp = _MAX_TMP                 # multiple of 8; ragged last block allowed
    grid = (pl.cdiv(n_packed, tmp),)

    def batch_spec(cols):
        return pl.BlockSpec((tmp, cols), lambda i: (i, 0))

    def resident(shape):
        return pl.BlockSpec(shape, lambda i: (0, 0))

    cost = pl.CostEstimate(
        flops=2 * B * (S * H + 2 * H + H * A),
        transcendentals=2 * B * H,
        bytes_accessed=4 * (B * (S + 2 + A) + S * H + 2 * H + H * A + 2 * H + A),
    )

    out_p = pl.pallas_call(
        _behavior_kernel,
        out_shape=jax.ShapeDtypeStruct((n_packed, P * A), f32),
        grid=grid,
        in_specs=[
            batch_spec(P * S),            # packed state      [tmp, P*S]
            batch_spec(P * 2),            # packed command    [tmp, P*2]
            resident((P * S, P * H)),     # block-diag W1 (resident)
            resident((1, P * H)),         # tiled b1
            resident((P * 2, P * H)),     # block-diag W2 * command_scale
            resident((1, P * H)),         # tiled b2
            resident((P * H, P * A)),     # block-diag W3 (resident)
            resident((1, P * A)),         # tiled b3
        ],
        out_specs=batch_spec(P * A),      # packed output     [tmp, P*A]
        compiler_params=pltpu.CompilerParams(
            dimension_semantics=("parallel",),   # shard batch tiles on v7x's 2 TCs
        ),
        cost_estimate=cost,
    )(xs_p, cmd_p, w1bd, b1t, w2bd, b2t, w3bd, b3t)

    return out_p.reshape(Bp, A)[:B]


def init_params(key, state_size, hidden_size, action_size):
    """PyTorch-style uniform(+/- 1/sqrt(fan_in)) init; weights stored [in, out]."""
    ks = jax.random.split(key, 6)

    def lin(kw, kb, fan_in, fan_out):
        bound = 1.0 / jnp.sqrt(fan_in)
        w = jax.random.uniform(kw, (fan_in, fan_out), jnp.float32, -bound, bound)
        b = jax.random.uniform(kb, (fan_out,), jnp.float32, -bound, bound)
        return w, b

    w1, b1 = lin(ks[0], ks[1], state_size, hidden_size)
    w2, b2 = lin(ks[2], ks[3], 2, hidden_size)
    w3, b3 = lin(ks[4], ks[5], hidden_size, action_size)
    return (w1, b1, w2, b2, w3, b3)


if __name__ == "__main__":
    key = jax.random.PRNGKey(0)
    k_params = jax.random.fold_in(key, 1234)

    STATE_SIZE = 16   # state features
    HIDDEN = 32       # args.hidden_size
    ACTIONS = 4       # action_size
    COMMAND_SCALE = 0.02  # args.command_scale (scalar; per-command [2] also works)

    params = init_params(k_params, STATE_SIZE, HIDDEN, ACTIONS)

    # jit the whole wrapper so the few tiny prep ops fuse with the kernel call.
    fwd = jax.jit(lambda s, r, h: behavior_func_forward(
        s, r, h, params, COMMAND_SCALE, use_pallas=True))

    def run_case(batch):
        ks, kr, kh = jax.random.split(jax.random.fold_in(key, batch), 3)
        state = jax.random.normal(ks, (batch, STATE_SIZE), jnp.float32)
        ret = jax.random.normal(kr, (batch, 1), jnp.float32)
        hor = jax.random.normal(kh, (batch, 1), jnp.float32)

        out = jax.block_until_ready(fwd(state, ret, hor))
        ref = _behavior_ref(state, ret, hor, params, COMMAND_SCALE)

        assert out.shape == (batch, ACTIONS)
        err = float(jnp.max(jnp.abs(out - ref)))
        assert jnp.allclose(out, ref, atol=2e-2, rtol=2e-2), (batch, err)

    run_case(64)       # primary small case (single block)
    run_case(13)       # ragged batch (pad-to-8 path, full-dim block)
    run_case(10000)    # multi-block pipeline + ragged last grid block

    print("KERNEL_OK")
</pallas_src>

<mosaic_0001>
module attributes {stable_mosaic.version = 11 : i64} {
  func.func @_behavior_kernel(%arg0: i32, %arg1: memref<8x128xf32, #tpu.memory_space<vmem>>, %arg2: memref<8x16xf32, #tpu.memory_space<vmem>>, %arg3: memref<128x256xf32, #tpu.memory_space<vmem>>, %arg4: memref<1x256xf32, #tpu.memory_space<vmem>>, %arg5: memref<16x256xf32, #tpu.memory_space<vmem>>, %arg6: memref<1x256xf32, #tpu.memory_space<vmem>>, %arg7: memref<256x32xf32, #tpu.memory_space<vmem>>, %arg8: memref<1x32xf32, #tpu.memory_space<vmem>>, %arg9: memref<8x32xf32, #tpu.memory_space<vmem>>) attributes {dimension_semantics = [#tpu.dimension_semantics<parallel>], iteration_bounds = array<i64: 1>, scalar_prefetch = 0 : i64, scratch_operands = 0 : i64, tpu.core_type = #tpu.core_type<tc>, window_params = [{transform_indices = @transform_0, window_bounds = array<i64: 8, 128>}, {transform_indices = @transform_1, window_bounds = array<i64: 8, 16>}, {pipeline_mode = #tpu.pipeline_mode<synchronous>, transform_indices = @transform_2, window_bounds = array<i64: 128, 256>}, {pipeline_mode = #tpu.pipeline_mode<synchronous>, transform_indices = @transform_3, window_bounds = array<i64: 1, 256>}, {pipeline_mode = #tpu.pipeline_mode<synchronous>, transform_indices = @transform_4, window_bounds = array<i64: 16, 256>}, {pipeline_mode = #tpu.pipeline_mode<synchronous>, transform_indices = @transform_5, window_bounds = array<i64: 1, 256>}, {pipeline_mode = #tpu.pipeline_mode<synchronous>, transform_indices = @transform_6, window_bounds = array<i64: 256, 32>}, {pipeline_mode = #tpu.pipeline_mode<synchronous>, transform_indices = @transform_7, window_bounds = array<i64: 1, 32>}, {transform_indices = @transform_8, window_bounds = array<i64: 8, 32>}]} {
    %c0 = arith.constant 0 : index
    %c0_0 = arith.constant 0 : index
    %0 = vector.load %arg1[%c0, %c0_0] : memref<8x128xf32, #tpu.memory_space<vmem>>, vector<8x128xf32>
    %c0_1 = arith.constant 0 : index
    %c0_2 = arith.constant 0 : index
    %1 = vector.load %arg3[%c0_1, %c0_2] : memref<128x256xf32, #tpu.memory_space<vmem>>, vector<128x256xf32>
    %cst = arith.constant dense<0.000000e+00> : vector<8x256xf32>
    %2 = tpu.matmul %0, %1, %cst {dimension_numbers = #tpu.dot_dimension_numbers<[1], [0], [0], [1], [0, 0, 1, 1], [], []>} : vector<8x128xf32>, vector<128x256xf32>, vector<8x256xf32> -> vector<8x256xf32>
    %c0_3 = arith.constant 0 : index
    %c0_4 = arith.constant 0 : index
    %3 = vector.load %arg2[%c0_3, %c0_4] : memref<8x16xf32, #tpu.memory_space<vmem>>, vector<8x16xf32>
    %c0_5 = arith.constant 0 : index
    %c0_6 = arith.constant 0 : index
    %4 = vector.load %arg5[%c0_5, %c0_6] : memref<16x256xf32, #tpu.memory_space<vmem>>, vector<16x256xf32>
    %cst_7 = arith.constant dense<0.000000e+00> : vector<8x256xf32>
    %5 = tpu.matmul %3, %4, %cst_7 {dimension_numbers = #tpu.dot_dimension_numbers<[1], [0], [0], [1], [0, 0, 1, 1], [], []>} : vector<8x16xf32>, vector<16x256xf32>, vector<8x256xf32> -> vector<8x256xf32>
    %c0_8 = arith.constant 0 : index
    %c0_9 = arith.constant 0 : index
    %6 = vector.load %arg4[%c0_8, %c0_9] : memref<1x256xf32, #tpu.memory_space<vmem>>, vector<1x256xf32>
    %7 = vector.broadcast %6 : vector<1x256xf32> to vector<8x256xf32>
    %8 = arith.addf %2, %7 : vector<8x256xf32>
    %cst_10 = arith.constant 5.000000e-01 : f32
    %9 = vector.broadcast %cst_10 : f32 to vector<8x256xf32>
    %10 = arith.mulf %9, %8 : vector<8x256xf32>
    %11 = math.tanh %10 : vector<8x256xf32>
    %cst_11 = arith.constant 5.000000e-01 : f32
    %12 = vector.broadcast %cst_11 : f32 to vector<8x256xf32>
    %13 = arith.mulf %12, %11 : vector<8x256xf32>
    %cst_12 = arith.constant 5.000000e-01 : f32
    %14 = vector.broadcast %cst_12 : f32 to vector<8x256xf32>
    %15 = arith.addf %13, %14 : vector<8x256xf32>
    %c0_13 = arith.constant 0 : index
    %c0_14 = arith.constant 0 : index
    %16 = vector.load %arg6[%c0_13, %c0_14] : memref<1x256xf32, #tpu.memory_space<vmem>>, vector<1x256xf32>
    %17 = vector.broadcast %16 : vector<1x256xf32> to vector<8x256xf32>
    %18 = arith.addf %5, %17 : vector<8x256xf32>
    %cst_15 = arith.constant 5.000000e-01 : f32
    %19 = vector.broadcast %cst_15 : f32 to vector<8x256xf32>
    %20 = arith.mulf %19, %18 : vector<8x256xf32>
    %21 = math.tanh %20 : vector<8x256xf32>
    %cst_16 = arith.constant 5.000000e-01 : f32
    %22 = vector.broadcast %cst_16 : f32 to vector<8x256xf32>
    %23 = arith.mulf %22, %21 : vector<8x256xf32>
    %cst_17 = arith.constant 5.000000e-01 : f32
    %24 = vector.broadcast %cst_17 : f32 to vector<8x256xf32>
    %25 = arith.addf %23, %24 : vector<8x256xf32>
    %26 = arith.mulf %15, %25 : vector<8x256xf32>
    %c0_18 = arith.constant 0 : index
    %c0_19 = arith.constant 0 : index
    %27 = vector.load %arg7[%c0_18, %c0_19] : memref<256x32xf32, #tpu.memory_space<vmem>>, vector<256x32xf32>
    %cst_20 = arith.constant dense<0.000000e+00> : vector<8x32xf32>
    %28 = tpu.matmul %26, %27, %cst_20 {dimension_numbers = #tpu.dot_dimension_numbers<[1], [0], [0], [1], [0, 0, 1, 1], [], []>} : vector<8x256xf32>, vector<256x32xf32>, vector<8x32xf32> -> vector<8x32xf32>
    %c0_21 = arith.constant 0 : index
    %c0_22 = arith.constant 0 : index
    %29 = vector.load %arg8[%c0_21, %c0_22] : memref<1x32xf32, #tpu.memory_space<vmem>>, vector<1x32xf32>
    %30 = vector.broadcast %29 : vector<1x32xf32> to vector<8x32xf32>
    %31 = arith.addf %28, %30 : vector<8x32xf32>
    %c0_23 = arith.constant 0 : index
    %c0_24 = arith.constant 0 : index
    %32 = vector.load %arg9[%c0_23, %c0_24] : memref<8x32xf32, #tpu.memory_space<vmem>>, vector<8x32xf32>
    tpu.vector_store %arg9[%c0_23, %c0_24], %31 {strides = array<i32>} : memref<8x32xf32, #tpu.memory_space<vmem>>, vector<8x32xf32>,
    return
  }
  func.func @transform_0(%arg0: i32) -> (i32, i32) {
    %c0_i32 = arith.constant 0 : i32
    %c0_i32_0 = arith.constant 0 : i32
    return %arg0, %c0_i32 : i32, i32
  }
  func.func @transform_1(%arg0: i32) -> (i32, i32) {
    %c0_i32 = arith.constant 0 : i32
    %c0_i32_0 = arith.constant 0 : i32
    return %arg0, %c0_i32 : i32, i32
  }
  func.func @transform_2(%arg0: i32) -> (i32, i32) {
    %c0_i32 = arith.constant 0 : i32
    %c0_i32_0 = arith.constant 0 : i32
    %c0_i32_1 = arith.constant 0 : i32
    return %c0_i32, %c0_i32_0 : i32, i32
  }
  func.func @transform_3(%arg0: i32) -> (i32, i32) {
    %c0_i32 = arith.constant 0 : i32
    %c0_i32_0 = arith.constant 0 : i32
    %c0_i32_1 = arith.constant 0 : i32
    return %c0_i32, %c0_i32_0 : i32, i32
  }
  func.func @transform_4(%arg0: i32) -> (i32, i32) {
    %c0_i32 = arith.constant 0 : i32
    %c0_i32_0 = arith.constant 0 : i32
    %c0_i32_1 = arith.constant 0 : i32
    return %c0_i32, %c0_i32_0 : i32, i32
  }
  func.func @transform_5(%arg0: i32) -> (i32, i32) {
    %c0_i32 = arith.constant 0 : i32
    %c0_i32_0 = arith.constant 0 : i32
    %c0_i32_1 = arith.constant 0 : i32
    return %c0_i32, %c0_i32_0 : i32, i32
  }
  func.func @transform_6(%arg0: i32) -> (i32, i32) {
    %c0_i32 = arith.constant 0 : i32
    %c0_i32_0 = arith.constant 0 : i32
    %c0_i32_1 = arith.constant 0 : i32
    return %c0_i32, %c0_i32_0 : i32, i32
  }
  func.func @transform_7(%arg0: i32) -> (i32, i32) {
    %c0_i32 = arith.constant 0 : i32
    %c0_i32_0 = arith.constant 0 : i32
    %c0_i32_1 = arith.constant 0 : i32
    return %c0_i32, %c0_i32_0 : i32, i32
  }
  func.func @transform_8(%arg0: i32) -> (i32, i32) {
    %c0_i32 = arith.constant 0 : i32
    %c0_i32_0 = arith.constant 0 : i32
    return %arg0, %c0_i32 : i32, i32
  }
}

</mosaic_0001>

<llo_original>
// kernel: tile.14
$region0: #{tile.14}
  #allocation0 [shape = 's32[1]{0}', space=sflag, size = 0x4, scoped, tag = 'scoped memory for tile.14']
  %s0 = inlined_call_operand.vmem [shape: f32[32], index: 0, kind: input, shape index: {}]
  %s1 = inlined_call_operand.vmem [shape: f32[8,32], index: 1, kind: output, shape index: {}]
  // Predicated region
  $region2: #{tile.14} parent=0 // pred_check
    _
  $region3: #{tile.14} parent=0 // pred_check_branch
    %3 = sbr.rel (0) target = $region5
  $region4: #{tile.14} parent=0 // pred_region
    _
  $region5: #{tile.14} parent=0 // pred_fallthru
    _
  %v4 = vld [vmem:[%s0] ss:$0 sm:$0xff]
  %5 = vst [vmem:[%s1] sm:$0xff] %v4

// kernel: tile.15
$region0: #{tile.15}
  %s0 = inlined_call_operand.vmem [shape: f32[8,32], index: 0, kind: input, shape index: {}]
  %s1 = inlined_call_operand.vmem [shape: f32[1,256], index: 1, kind: output, shape index: {}]
  $region1: #{tile.15} parent=0
    #allocation0 [shape = 'u8[8192]{0}', space=vmem, size = 0x2000, scoped, tag = 'scoped mem for output reshape']
    %s2 = smov 3
    %v3 = vld [vmem:[%s0] ss:$4 sm:%s2]
    %vm4 = vcmask 261120
    %5 = vst.msk [vmem:[#allocation0] ss:$8 sm:$0x3] %vm4, %v3
    %s6 = scalar_lea.vmem %s0, 3
    %s7 = smov 3
    %v8 = vld [vmem:[%s6] ss:$4 sm:%s7]
    %9 = vrot.lane.b32.xlu0 %v8, 96
    %v10 = vpop.permute.xlu0 %9
    %vm11 = vcmask 1048320
    %12 = vst.msk [vmem:[#allocation0] ss:$8 sm:$0x3] %vm11, %v10
    %s13 = scalar_lea.vmem %s0, 2
    %s14 = smov 3
    %v15 = vld [vmem:[%s13] ss:$4 sm:%s14]
    %16 = vrot.lane.b32.xlu0 %v15, 64
    %v17 = vpop.permute.xlu0 %16
    %vm18 = vcmask 785920
    %19 = vst.msk [vmem:[#allocation0] ss:$8 sm:$0x3] %vm18, %v17
    %s20 = scalar_lea.vmem %s0, 1
    %s21 = smov 3
    %v22 = vld [vmem:[%s20] ss:$4 sm:%s21]
    %23 = vrot.lane.b32.xlu0 %v22, 32
    %v24 = vpop.permute.xlu0 %23
    %vm25 = vcmask 523520
    %26 = vst.msk [vmem:[#allocation0] ss:$8 sm:$0x3] %vm25, %v24
    %s28 = sshllo.u32 0, 1
    %v30 = vld [vmem:[#allocation0] sm:%s28]
    %s31 = sshllo.u32 0, 1
    %32 = vst [vmem:[%s1] sm:%s31] %v30
    %s33 = scalar_lea.vmem [#allocation0], 8
    %v34 = vld [vmem:[%s33] sm:%s28]
    %s35 = sshllo.u32 0, 1
    %s36 = scalar_lea.vmem %s1, 1
    %37 = vst [vmem:[%s36] sm:%s35] %v34

// kernel: tile.22
$region0: #{tile.22}
  #allocation0 [shape = 's32[1]{0}', space=sflag, size = 0x4, scoped, tag = 'scoped memory for tile.22']
  %s0 = inlined_call_operand.vmem [shape: f32[4], index: 0, kind: input, shape index: {}]
  %s1 = inlined_call_operand.vmem [shape: f32[8,4], index: 1, kind: output, shape index: {}]
  // Predicated region
  $region2: #{tile.22} parent=0 // pred_check
    _
  $region3: #{tile.22} parent=0 // pred_check_branch
    %3 = sbr.rel (0) target = $region5
  $region4: #{tile.22} parent=0 // pred_region
    _
  $region5: #{tile.22} parent=0 // pred_fallthru
    _
  %v4 = vld [vmem:[%s0] ss:$0 sm:$0xff]
  %5 = vst [vmem:[%s1] sm:$0xff] %v4

// kernel: tile.23
$region0: #{tile.23}
  %s0 = inlined_call_operand.vmem [shape: f32[8,4], index: 0, kind: input, shape index: {}]
  %s1 = inlined_call_operand.vmem [shape: f32[1,32], index: 1, kind: output, shape index: {}]
  $region1: #{tile.23} parent=0
    #allocation0 [shape = 'u8[4096]{0}', space=vmem, size = 0x1000, scoped, tag = 'scoped mem for output reshape']
    %v2 = vld [vmem:[%s0] sm:$0x1]
    %vm3 = vcmask 31744
    %4 = vst.msk [vmem:[#allocation0] sm:$0x1] %vm3, %v2
    %s5 = scalar_lea.vmem %s0, 7
    %v6 = vld [vmem:[%s5] sm:$0x1]
    %7 = vrot.lane.b32.xlu0 %v6, 28
    %v8 = vpop.permute.xlu0 %7
    %vm9 = vcmask 261344
    %10 = vst.msk [vmem:[#allocation0] sm:$0x1] %vm9, %v8
    %s11 = scalar_lea.vmem %s0, 6
    %v12 = vld [vmem:[%s11] sm:$0x1]
    %13 = vrot.lane.b32.xlu0 %v12, 24
    %v14 = vpop.permute.xlu0 %13
    %vm15 = vcmask 228544
    %16 = vst.msk [vmem:[#allocation0] sm:$0x1] %vm15, %v14
    %s17 = scalar_lea.vmem %s0, 5
    %v18 = vld [vmem:[%s17] sm:$0x1]
    %19 = vrot.lane.b32.xlu0 %v18, 20
    %v20 = vpop.permute.xlu0 %19
    %vm21 = vcmask 195744
    %22 = vst.msk [vmem:[#allocation0] sm:$0x1] %vm21, %v20
    %s23 = scalar_lea.vmem %s0, 4
    %v24 = vld [vmem:[%s23] sm:$0x1]
    %25 = vrot.lane.b32.xlu0 %v24, 16
    %v26 = vpop.permute.xlu0 %25
    %vm27 = vcmask 162944
    %28 = vst.msk [vmem:[#allocation0] sm:$0x1] %vm27, %v26
    %s29 = scalar_lea.vmem %s0, 3
    %v30 = vld [vmem:[%s29] sm:$0x1]
    %31 = vrot.lane.b32.xlu0 %v30, 12
    %v32 = vpop.permute.xlu0 %31
    %vm33 = vcmask 130144
    %34 = vst.msk [vmem:[#allocation0] sm:$0x1] %vm33, %v32
    %s35 = scalar_lea.vmem %s0, 2
    %v36 = vld [vmem:[%s35] sm:$0x1]
    %37 = vrot.lane.b32.xlu0 %v36, 8
    %v38 = vpop.permute.xlu0 %37
    %vm39 = vcmask 97344
    %40 = vst.msk [vmem:[#allocation0] sm:$0x1] %vm39, %v38
    %s41 = scalar_lea.vmem %s0, 1
    %v42 = vld [vmem:[%s41] sm:$0x1]
    %43 = vrot.lane.b32.xlu0 %v42, 4
    %v44 = vpop.permute.xlu0 %43
    %vm45 = vcmask 64544
    %46 = vst.msk [vmem:[#allocation0] sm:$0x1] %vm45, %v44
    %s48 = sshllo.u32 0, 1
    %v50 = vld [vmem:[#allocation0] sm:%s48]
    %s51 = sshllo.u32 0, 1
    %52 = vst [vmem:[%s1] sm:%s51] %v50

// kernel: _lambda_.1
$region0: #{_lambda_.1}
  #allocation0 [shape = 'u32[]', space=smem, size = 0x4, offset = 0x4, fixed_abs, tag = 'smem constant byte address 0x4 - core index']
  #allocation1 [shape = 'u32[144,128]{1,0:T(1,128)}', space=vmem, size = 0x12000, scoped, tag = 'internal scratch']
  %s0 = inlined_call_operand.vmem [shape: f32[8,128], index: 0, kind: input, shape index: {}]
  %s1 = inlined_call_operand.vmem [shape: f32[8,16], index: 1, kind: input, shape index: {}]
  %s2 = inlined_call_operand.vmem [shape: f32[128,256], index: 2, kind: input, shape index: {}]
  %s3 = inlined_call_operand.vmem [shape: f32[1,256], index: 3, kind: input, shape index: {}]
  %s4 = inlined_call_operand.vmem [shape: f32[16,256], index: 4, kind: input, shape index: {}]
  %s5 = inlined_call_operand.vmem [shape: f32[1,256], index: 5, kind: input, shape index: {}]
  %s6 = inlined_call_operand.vmem [shape: f32[256,32], index: 6, kind: input, shape index: {}]
  %s7 = inlined_call_operand.vmem [shape: f32[1,32], index: 7, kind: input, shape index: {}]
  %s8 = inlined_call_operand.vmem [shape: f32[8,32], index: 8, kind: output, shape index: {}]
  %s9 = sld [smem:[#allocation0]]
  $region42: #{_lambda_.1} parent=0
    _
  %s11 = ssub.s32 1, %s9
  %s12 = scalar_select 0, %s11, %s9
  // Predicated region
  $region2: #{_lambda_.1} parent=0 // pred_check
    _
  $region3: #{_lambda_.1} parent=0 // pred_check_branch
    %14 = sbr.rel (0) target = $region5
  $region4: #{_lambda_.1} parent=0 // pred_region
    _
  $region5: #{_lambda_.1} parent=0 // pred_fallthru
    _
  // Predicated region
  $region6: #{_lambda_.1} parent=0 // pred_check
    _
  $region7: #{_lambda_.1} parent=0 // pred_check_branch
    %16 = sbr.rel (0) target = $region9
  $region8: #{_lambda_.1} parent=0 // pred_region
    _
  $region9: #{_lambda_.1} parent=0 // pred_fallthru
    _
  // Predicated region
  $region10: #{_lambda_.1} parent=0 // pred_check
    _
  $region11: #{_lambda_.1} parent=0 // pred_check_branch
    %18 = sbr.rel (0) target = $region13
  $region12: #{_lambda_.1} parent=0 // pred_region
    _
  $region13: #{_lambda_.1} parent=0 // pred_fallthru
    _
  // Predicated region
  $region14: #{_lambda_.1} parent=0 // pred_check
    _
  $region15: #{_lambda_.1} parent=0 // pred_check_branch
    %20 = sbr.rel (0) target = $region17
  $region16: #{_lambda_.1} parent=0 // pred_region
    _
  $region17: #{_lambda_.1} parent=0 // pred_fallthru
    _
  // Predicated region
  $region18: #{_lambda_.1} parent=0 // pred_check
    _
  $region19: #{_lambda_.1} parent=0 // pred_check_branch
    %22 = sbr.rel (0) target = $region21
  $region20: #{_lambda_.1} parent=0 // pred_region
    _
  $region21: #{_lambda_.1} parent=0 // pred_fallthru
    _
  // Predicated region
  $region22: #{_lambda_.1} parent=0 // pred_check
    _
  $region23: #{_lambda_.1} parent=0 // pred_check_branch
    %24 = sbr.rel (0) target = $region25
  $region24: #{_lambda_.1} parent=0 // pred_region
    _
  $region25: #{_lambda_.1} parent=0 // pred_fallthru
    _
  // Predicated region
  $region26: #{_lambda_.1} parent=0 // pred_check
    _
  $region27: #{_lambda_.1} parent=0 // pred_check_branch
    %26 = sbr.rel (0) target = $region29
  $region28: #{_lambda_.1} parent=0 // pred_region
    _
  $region29: #{_lambda_.1} parent=0 // pred_fallthru
    _
  // Predicated region
  $region30: #{_lambda_.1} parent=0 // pred_check
    _
  $region31: #{_lambda_.1} parent=0 // pred_check_branch
    %28 = sbr.rel (0) target = $region33
  $region32: #{_lambda_.1} parent=0 // pred_region
    _
  $region33: #{_lambda_.1} parent=0 // pred_fallthru
    _
  %v29 = vld [vmem:[%s0] sm:$0xff]
  %v30 = vld [vmem:[%s2] sm:$0xff]
  %v31 = vld [vmem:[%s2 + $0x8] sm:$0xff]
  %v32 = vld [vmem:[%s2 + $0x10] sm:$0xff]
  %v33 = vld [vmem:[%s2 + $0x18] sm:$0xff]
  %v34 = vld [vmem:[%s2 + $0x20] sm:$0xff]
  %v35 = vld [vmem:[%s2 + $0x28] sm:$0xff]
  %v36 = vld [vmem:[%s2 + $0x30] sm:$0xff]
  %v37 = vld [vmem:[%s2 + $0x38] sm:$0xff]
  %v38 = vld [vmem:[%s2 + $0x40] sm:$0xff]
  %v39 = vld [vmem:[%s2 + $0x48] sm:$0xff]
  %v40 = vld [vmem:[%s2 + $0x50] sm:$0xff]
  %v41 = vld [vmem:[%s2 + $0x58] sm:$0xff]
  %v42 = vld [vmem:[%s2 + $0x60] sm:$0xff]
  %v43 = vld [vmem:[%s2 + $0x68] sm:$0xff]
  %v44 = vld [vmem:[%s2 + $0x70] sm:$0xff]
  %v45 = vld [vmem:[%s2 + $0x78] sm:$0xff]
  %v46 = vld [vmem:[%s2 + $0x80] sm:$0xff]
  %v47 = vld [vmem:[%s2 + $0x88] sm:$0xff]
  %v48 = vld [vmem:[%s2 + $0x90] sm:$0xff]
  %v49 = vld [vmem:[%s2 + $0x98] sm:$0xff]
  %v50 = vld [vmem:[%s2 + $0xa0] sm:$0xff]
  %v51 = vld [vmem:[%s2 + $0xa8] sm:$0xff]
  %v52 = vld [vmem:[%s2 + $0xb0] sm:$0xff]
  %v53 = vld [vmem:[%s2 + $0xb8] sm:$0xff]
  %v54 = vld [vmem:[%s2 + $0xc0] sm:$0xff]
  %v55 = vld [vmem:[%s2 + $0xc8] sm:$0xff]
  %v56 = vld [vmem:[%s2 + $0xd0] sm:$0xff]
  %v57 = vld [vmem:[%s2 + $0xd8] sm:$0xff]
  %v58 = vld [vmem:[%s2 + $0xe0] sm:$0xff]
  %v59 = vld [vmem:[%s2 + $0xe8] sm:$0xff]
  %v60 = vld [vmem:[%s2 + $0xf0] sm:$0xff]
  %v61 = vld [vmem:[%s2 + $0xf8] sm:$0xff]
  %v62 = vld [vmem:[%s1] sm:$0xff]
  %v63 = vld [vmem:[%s4] sm:$0xff]
  %v64 = vld [vmem:[%s4 + $0x8] sm:$0xff]
  %v65 = vld [vmem:[%s4 + $0x10] sm:$0xff]
  %v66 = vld [vmem:[%s4 + $0x18] sm:$0xff]
  %v67 = vld [vmem:[%s3] sm:$0x3]
  %v69 = vlaneseq
  %v70 = vshrl.u32 %v69, 7
  %v71 = vsub.s32 0, %v70
  %v72 = vrot.slane %v67, %v71
  %v73 = vlaneseq
  %v74 = vshrl.u32 %v73, 7
  %v75 = vsub.s32 1, %v74
  %v76 = vrot.slane %v67, %v75
  %79 = vmatprep.subr.mxu0 %v31
  %80 = vmatpush1.msra.mxu0 %v30
  %81 = vmatprep.subr.mxu0 %v33
  %82 = vmatpush1.msra.mxu0 %v32
  %83 = vmatprep.subr.mxu0 %v35
  %84 = vmatpush1.msra.mxu0 %v34
  %85 = vmatprep.subr.mxu0 %v37
  %86 = vmatpush1.msra.mxu0 %v36
  %87 = vmatprep.subr.mxu0 %v39
  %88 = vmatpush1.msra.mxu0 %v38
  %89 = vmatprep.subr.mxu0 %v41
  %90 = vmatpush1.msra.mxu0 %v40
  %91 = vmatprep.subr.mxu0 %v43
  %92 = vmatpush1.msra.mxu0 %v42
  %93 = vmatprep.subr.mxu0 %v45
  %94 = vmatpush1.msra.mxu0 %v44
  %95 = vmatprep.subr.mxu0 %v47
  %96 = vmatpush1.msra.mxu0 %v46
  %97 = vmatprep.subr.mxu0 %v49
  %98 = vmatpush1.msra.mxu0 %v48
  %99 = vmatprep.subr.mxu0 %v51
  %100 = vmatpush1.msra.mxu0 %v50
  %101 = vmatprep.subr.mxu0 %v53
  %102 = vmatpush1.msra.mxu0 %v52
  %103 = vmatprep.subr.mxu0 %v55
  %104 = vmatpush1.msra.mxu0 %v54
  %105 = vmatprep.subr.mxu0 %v57
  %106 = vmatpush1.msra.mxu0 %v56
  %107 = vmatprep.subr.mxu0 %v59
  %108 = vmatpush1.msra.mxu0 %v58
  %109 = vmatprep.subr.mxu0 %v61
  %110 = vmatpush1.msra.mxu0 %v60
  %111 = vmatprep.subr.mxu0 0.0
  %112 = vmatpush1.msra.mxu0 0.0
  %113 = vmatprep.subr.mxu0 0.0
  %114 = vmatpush1.msra.mxu0 0.0
  %115 = vmatprep.subr.mxu0 0.0
  %116 = vmatpush1.msra.mxu0 0.0
  %117 = vmatprep.subr.mxu0 0.0
  %118 = vmatpush1.msra.mxu0 0.0
  %119 = vmatprep.subr.mxu0 0.0
  %120 = vmatpush1.msra.mxu0 0.0
  %121 = vmatprep.subr.mxu0 0.0
  %122 = vmatpush1.msra.mxu0 0.0
  %123 = vmatprep.subr.mxu0 0.0
  %124 = vmatpush1.msra.mxu0 0.0
  %125 = vmatprep.subr.mxu0 0.0
  %126 = vmatpush1.msra.mxu0 0.0
  %127 = vmatprep.subr.mxu0 0.0
  %128 = vmatpush1.msra.mxu0 0.0
  %129 = vmatprep.subr.mxu0 0.0
  %130 = vmatpush1.msra.mxu0 0.0
  %131 = vmatprep.subr.mxu0 0.0
  %132 = vmatpush1.msra.mxu0 0.0
  %133 = vmatprep.subr.mxu0 0.0
  %134 = vmatpush1.msra.mxu0 0.0
  %135 = vmatprep.subr.mxu0 0.0
  %136 = vmatpush1.msra.mxu0 0.0
  %137 = vmatprep.subr.mxu0 0.0
  %138 = vmatpush1.msra.mxu0 0.0
  %139 = vmatprep.subr.mxu0 0.0
  %140 = vmatpush1.msra.mxu0 0.0
  %141 = vmatprep.subr.mxu0 0.0
  %142 = vmatpush1.msra.mxu0 0.0
  %143 = vmatprep.mubr.f32.mxu0 0.0
  %144 = vmatmul.mubr.f32.gmra.mrb[0].mxu0 %v29
  %v145 = vpop.f32.mrb[0].mxu0
  %v146 = vadd.f32 %v72, %v145
  %v147 = vpop.f32.mrb[0].mxu0
  %v148 = vadd.f32 %v76, %v147
  %149 = vdwg.mxu0
  %v150 = vmul.f32 %v146, 0.5
  %v151 = vmul.f32 %v148, 0.5
  %v152 = vtanh.pop %v150
  %v153 = vtanh.pop %v151
  %v154 = vmul.f32 %v152, 0.5
  %v155 = vmul.f32 %v153, 0.5
  %v156 = vadd.f32 %v154, 0.5
  %v157 = vadd.f32 %v155, 0.5
  %v158 = vld [vmem:[%s5] sm:$0x3]
  %v160 = vlaneseq
  %v161 = vshrl.u32 %v160, 7
  %v162 = vsub.s32 0, %v161
  %v163 = vrot.slane %v158, %v162
  %v164 = vlaneseq
  %v165 = vshrl.u32 %v164, 7
  %v166 = vsub.s32 1, %v165
  %v167 = vrot.slane %v158, %v166
  %vm170 = vcmask 130048
  %v172 = vsel %vm170, %v62, 0
  %174 = vmatprep.subr.mxu0 %v64
  %175 = vmatpush1.msra.mxu0 %v63
  %176 = vmatprep.subr.mxu0 %v66
  %177 = vmatpush1.msra.mxu0 %v65
  %178 = vmatprep.subr.mxu0 0.0
  %179 = vmatpush1.msra.mxu0 0.0
  %180 = vmatprep.subr.mxu0 0.0
  %181 = vmatpush1.msra.mxu0 0.0
  %182 = vmatprep.subr.mxu0 0.0
  %183 = vmatpush1.msra.mxu0 0.0
  %184 = vmatprep.subr.mxu0 0.0
  %185 = vmatpush1.msra.mxu0 0.0
  %186 = vmatprep.subr.mxu0 0.0
  %187 = vmatpush1.msra.mxu0 0.0
  %188 = vmatprep.subr.mxu0 0.0
  %189 = vmatpush1.msra.mxu0 0.0
  %190 = vmatprep.subr.mxu0 0.0
  %191 = vmatpush1.msra.mxu0 0.0
  %192 = vmatprep.subr.mxu0 0.0
  %193 = vmatpush1.msra.mxu0 0.0
  %194 = vmatprep.subr.mxu0 0.0
  %195 = vmatpush1.msra.mxu0 0.0
  %196 = vmatprep.subr.mxu0 0.0
  %197 = vmatpush1.msra.mxu0 0.0
  %198 = vmatprep.subr.mxu0 0.0
  %199 = vmatpush1.msra.mxu0 0.0
  %200 = vmatprep.subr.mxu0 0.0
  %201 = vmatpush1.msra.mxu0 0.0
  %202 = vmatprep.subr.mxu0 0.0
  %203 = vmatpush1.msra.mxu0 0.0
  %204 = vmatprep.subr.mxu0 0.0
  %205 = vmatpush1.msra.mxu0 0.0
  %206 = vmatprep.subr.mxu0 0.0
  %207 = vmatpush1.msra.mxu0 0.0
  %208 = vmatprep.subr.mxu0 0.0
  %209 = vmatpush1.msra.mxu0 0.0
  %210 = vmatprep.subr.mxu0 0.0
  %211 = vmatpush1.msra.mxu0 0.0
  %212 = vmatprep.subr.mxu0 0.0
  %213 = vmatpush1.msra.mxu0 0.0
  %214 = vmatprep.subr.mxu0 0.0
  %215 = vmatpush1.msra.mxu0 0.0
  %216 = vmatprep.subr.mxu0 0.0
  %217 = vmatpush1.msra.mxu0 0.0
  %218 = vmatprep.subr.mxu0 0.0
  %219 = vmatpush1.msra.mxu0 0.0
  %220 = vmatprep.subr.mxu0 0.0
  %221 = vmatpush1.msra.mxu0 0.0
  %222 = vmatprep.subr.mxu0 0.0
  %223 = vmatpush1.msra.mxu0 0.0
  %224 = vmatprep.subr.mxu0 0.0
  %225 = vmatpush1.msra.mxu0 0.0
  %226 = vmatprep.subr.mxu0 0.0
  %227 = vmatpush1.msra.mxu0 0.0
  %228 = vmatprep.subr.mxu0 0.0
  %229 = vmatpush1.msra.mxu0 0.0
  %230 = vmatprep.subr.mxu0 0.0
  %231 = vmatpush1.msra.mxu0 0.0
  %232 = vmatprep.subr.mxu0 0.0
  %233 = vmatpush1.msra.mxu0 0.0
  %234 = vmatprep.subr.mxu0 0.0
  %235 = vmatpush1.msra.mxu0 0.0
  %236 = vmatprep.subr.mxu0 0.0
  %237 = vmatpush1.msra.mxu0 0.0
  %238 = vmatprep.mubr.f32.mxu0 0.0
  %239 = vmatmul.mubr.f32.gmra.mrb[0].mxu0 %v172
  %v240 = vpop.f32.mrb[0].mxu0
  %v241 = vadd.f32 %v163, %v240
  %v242 = vpop.f32.mrb[0].mxu0
  %v243 = vadd.f32 %v167, %v242
  %244 = vdwg.mxu0
  %v245 = vmul.f32 %v241, 0.5
  %v246 = vmul.f32 %v243, 0.5
  %v247 = vtanh.pop %v245
  %v248 = vtanh.pop %v246
  %v249 = vmul.f32 %v247, 0.5
  %v250 = vmul.f32 %v248, 0.5
  %v251 = vadd.f32 %v249, 0.5
  %v252 = vadd.f32 %v250, 0.5
  %v253 = vmul.f32 %v156, %v251
  %v254 = vmul.f32 %v157, %v252
  %v255 = vld [vmem:[%s6] sm:$0xff]
  %v256 = vld [vmem:[%s6 + $0x8] sm:$0xff]
  %v257 = vld [vmem:[%s6 + $0x10] sm:$0xff]
  %v258 = vld [vmem:[%s6 + $0x18] sm:$0xff]
  %v259 = vld [vmem:[%s6 + $0x20] sm:$0xff]
  %v260 = vld [vmem:[%s6 + $0x28] sm:$0xff]
  %v261 = vld [vmem:[%s6 + $0x30] sm:$0xff]
  %v262 = vld [vmem:[%s6 + $0x38] sm:$0xff]
  %v263 = vld [vmem:[%s6 + $0x40] sm:$0xff]
  %v264 = vld [vmem:[%s6 + $0x48] sm:$0xff]
  %v265 = vld [vmem:[%s6 + $0x50] sm:$0xff]
  %v266 = vld [vmem:[%s6 + $0x58] sm:$0xff]
  %v267 = vld [vmem:[%s6 + $0x60] sm:$0xff]
  %v268 = vld [vmem:[%s6 + $0x68] sm:$0xff]
  %v269 = vld [vmem:[%s6 + $0x70] sm:$0xff]
  %v270 = vld [vmem:[%s6 + $0x78] sm:$0xff]
  %v271 = vld [vmem:[%s6 + $0x80] sm:$0xff]
  %v272 = vld [vmem:[%s6 + $0x88] sm:$0xff]
  %v273 = vld [vmem:[%s6 + $0x90] sm:$0xff]
  %v274 = vld [vmem:[%s6 + $0x98] sm:$0xff]
  %v275 = vld [vmem:[%s6 + $0xa0] sm:$0xff]
  %v276 = vld [vmem:[%s6 + $0xa8] sm:$0xff]
  %v277 = vld [vmem:[%s6 + $0xb0] sm:$0xff]
  %v278 = vld [vmem:[%s6 + $0xb8] sm:$0xff]
  %v279 = vld [vmem:[%s6 + $0xc0] sm:$0xff]
  %v280 = vld [vmem:[%s6 + $0xc8] sm:$0xff]
  %v281 = vld [vmem:[%s6 + $0xd0] sm:$0xff]
  %v282 = vld [vmem:[%s6 + $0xd8] sm:$0xff]
  %v283 = vld [vmem:[%s6 + $0xe0] sm:$0xff]
  %v284 = vld [vmem:[%s6 + $0xe8] sm:$0xff]
  %v285 = vld [vmem:[%s6 + $0xf0] sm:$0xff]
  %v286 = vld [vmem:[%s6 + $0xf8] sm:$0xff]
  %v287 = vld [vmem:[%s7] sm:$0x1]
  %v289 = vlaneseq
  %v290 = vshrl.u32 %v289, 7
  %v291 = vsub.s32 0, %v290
  %v292 = vrot.slane %v287, %v291
  %294 = vmatprep.subr.mxu0 0.0
  %295 = vmatpush1.msra.mxu0 %v255
  %296 = vmatprep.subr.mxu0 0.0
  %297 = vmatpush1.msra.mxu0 %v256
  %298 = vmatprep.subr.mxu0 0.0
  %299 = vmatpush1.msra.mxu0 %v257
  %300 = vmatprep.subr.mxu0 0.0
  %301 = vmatpush1.msra.mxu0 %v258
  %302 = vmatprep.subr.mxu0 0.0
  %303 = vmatpush1.msra.mxu0 %v259
  %304 = vmatprep.subr.mxu0 0.0
  %305 = vmatpush1.msra.mxu0 %v260
  %306 = vmatprep.subr.mxu0 0.0
  %307 = vmatpush1.msra.mxu0 %v261
  %308 = vmatprep.subr.mxu0 0.0
  %309 = vmatpush1.msra.mxu0 %v262
  %310 = vmatprep.subr.mxu0 0.0
  %311 = vmatpush1.msra.mxu0 %v263
  %312 = vmatprep.subr.mxu0 0.0
  %313 = vmatpush1.msra.mxu0 %v264
  %314 = vmatprep.subr.mxu0 0.0
  %315 = vmatpush1.msra.mxu0 %v265
  %316 = vmatprep.subr.mxu0 0.0
  %317 = vmatpush1.msra.mxu0 %v266
  %318 = vmatprep.subr.mxu0 0.0
  %319 = vmatpush1.msra.mxu0 %v267
  %320 = vmatprep.subr.mxu0 0.0
  %321 = vmatpush1.msra.mxu0 %v268
  %322 = vmatprep.subr.mxu0 0.0
  %323 = vmatpush1.msra.mxu0 %v269
  %324 = vmatprep.subr.mxu0 0.0
  %325 = vmatpush1.msra.mxu0 %v270
  %326 = vmatprep.subr.mxu0 0.0
  %327 = vmatpush1.msra.mxu0 %v271
  %328 = vmatprep.subr.mxu0 0.0
  %329 = vmatpush1.msra.mxu0 %v272
  %330 = vmatprep.subr.mxu0 0.0
  %331 = vmatpush1.msra.mxu0 %v273
  %332 = vmatprep.subr.mxu0 0.0
  %333 = vmatpush1.msra.mxu0 %v274
  %334 = vmatprep.subr.mxu0 0.0
  %335 = vmatpush1.msra.mxu0 %v275
  %336 = vmatprep.subr.mxu0 0.0
  %337 = vmatpush1.msra.mxu0 %v276
  %338 = vmatprep.subr.mxu0 0.0
  %339 = vmatpush1.msra.mxu0 %v277
  %340 = vmatprep.subr.mxu0 0.0
  %341 = vmatpush1.msra.mxu0 %v278
  %342 = vmatprep.subr.mxu0 0.0
  %343 = vmatpush1.msra.mxu0 %v279
  %344 = vmatprep.subr.mxu0 0.0
  %345 = vmatpush1.msra.mxu0 %v280
  %346 = vmatprep.subr.mxu0 0.0
  %347 = vmatpush1.msra.mxu0 %v281
  %348 = vmatprep.subr.mxu0 0.0
  %349 = vmatpush1.msra.mxu0 %v282
  %350 = vmatprep.subr.mxu0 0.0
  %351 = vmatpush1.msra.mxu0 %v283
  %352 = vmatprep.subr.mxu0 0.0
  %353 = vmatpush1.msra.mxu0 %v284
  %354 = vmatprep.subr.mxu0 0.0
  %355 = vmatpush1.msra.mxu0 %v285
  %356 = vmatprep.subr.mxu0 0.0
  %357 = vmatpush1.msra.mxu0 %v286
  %358 = vmatprep.mubr.f32.mxu0 %v254
  %359 = vmatmul.mubr.f32.gmra.mrb[0].mxu0 %v253
  %v360 = vpop.f32.mrb[0].mxu0
  %v361 = vadd.f32 %v292, %v360
  %v362 = vpop.f32.mrb[0].mxu0
  %363 = vdwg.mxu0
  %vm364 = vcmask 261120
  %365 = vst.msk [vmem:[%s8] sm:$0xff] %vm364, %v361
  // Predicated region
  $region34: #{_lambda_.1} parent=0 // pred_check
    _
  $region35: #{_lambda_.1} parent=0 // pred_check_branch
    %367 = sbr.rel (0) target = $region37
  $region36: #{_lambda_.1} parent=0 // pred_region
    _
  $region37: #{_lambda_.1} parent=0 // pred_fallthru
    _
  // Predicated region
  $region38: #{_lambda_.1} parent=0 // pred_check
    _
  $region39: #{_lambda_.1} parent=0 // pred_check_branch
    %369 = sbr.rel (0) target = $region41
  $region40: #{_lambda_.1} parent=0 // pred_region
    _
  $region41: #{_lambda_.1} parent=0 // pred_fallthru
    _

</llo_original>
